<compile_context>
chip_gen: v5e
topology: v5e:2x2
jax: 0.10.0
libtpu: 0.0.40
codegen_flags: <defaults>
</compile_context>

<pallas_src>
import jax
import jax.numpy as jnp
from jax.experimental import pallas as pl
from jax.experimental.pallas import tpu as pltpu

DOF = 2                      # q = (x, y) Cartesian position of the bob
N_CONSTR = 1                 # one holonomic constraint: x^2 + y^2 - L^2 = 0
N_STATES = 2 * DOF + N_CONSTR  # coords = [q(2), qdot(2), lambda(1)] -> (bs, 5)
LANES = 128


def dae_kernel(params_ref, x_ref, o_ref):
    """Constrained single-pendulum dynamics, feature-major layout.

    params_ref : SMEM (2,) f32  -> [mass1, F1]   (learned scalars)
    x_ref      : VMEM (4, TB) f32 -> rows = [qx, qy, vx, vy], batch on lanes
    o_ref      : VMEM (4, TB) f32 -> rows = [vx, vy, ax, ay]
    """
    m1 = params_ref[0]
    f1 = params_ref[1]
    inv_m1 = 1.0 / m1                       # scalar-unit divide, hoisted once

    qx = x_ref[0:1, :]
    qy = x_ref[1:2, :]
    vx = x_ref[2:3, :]
    vy = x_ref[3:4, :]

    # Explicit row adds on the VPU (no XLU cross-lane reduce for a 2-wide sum).
    vv = vx * vx + vy * vy                  # |qdot|^2
    qq = qx * qx + qy * qy                  # |q|^2  (no zero guard: faithful to module)

    # F = [0, -F1]  =>  q.F = -F1 * qy   (F tensor eliminated algebraically)
    #   M a = F + lam * q ,  q.a + v.v = 0  =>  lam = (F1*qy - m1*|v|^2) / |q|^2
    lam = (f1 * qy - m1 * vv) / qq

    # d_coords = [qdot, qddot]; lambda block dropped by DAE_NN.forward.
    o_ref[0:2, :] = x_ref[2:4, :]                    # dq/dt = qdot
    o_ref[2:3, :] = (lam * qx) * inv_m1              # ax = lam*qx / m1
    o_ref[3:4, :] = (lam * qy - f1) * inv_m1         # ay = (lam*qy - F1) / m1


def dae_nn_forward(t, coords, mass1, F1, *, block_b=4096):
    """JAX wrapper reproducing DAE_NN.forward(t, coords)."""
    del t  # autonomous system: t unused by F_Net / M_Net
    bs, ns = coords.shape
    assert ns == N_STATES, f"expected coords with {N_STATES} states, got {ns}"
    out_dtype = coords.dtype

    params = jnp.concatenate([mass1, F1]).astype(jnp.float32)      # (2,) SMEM scalars

    # Layout plumbing: feature-major, batch on lanes, compute in f32.
    x = coords[:, :2 * DOF].T.astype(jnp.float32)                  # (4, bs)

    # Lane-dense, pipelined batch tiling.
    bs_pad = max(LANES, -(-bs // LANES) * LANES)
    tb = min(block_b, bs_pad)
    bs_pad = -(-bs_pad // tb) * tb
    if bs_pad != bs:
        # pad dead lanes with 1.0 so |q|^2 != 0 there (no spurious NaNs)
        x = jnp.pad(x, ((0, 0), (0, bs_pad - bs)), constant_values=1.0)

    out_t = pl.pallas_call(
        dae_kernel,
        out_shape=jax.ShapeDtypeStruct((2 * DOF, bs_pad), jnp.float32),
        grid_spec=pltpu.PrefetchScalarGridSpec(
            num_scalar_prefetch=0,
            grid=(bs_pad // tb,),
            in_specs=[
                pl.BlockSpec(memory_space=pltpu.MemorySpace.SMEM),   # params (2,)
                pl.BlockSpec((2 * DOF, tb), lambda i: (0, i)),       # x tile (4, tb)
            ],
            out_specs=pl.BlockSpec((2 * DOF, tb), lambda i: (0, i)),
        ),
        compiler_params=pltpu.CompilerParams(
            # batch tiles are independent -> megacore sharding on v7x, no-op on v5e/v6e
            dimension_semantics=("parallel",),
        ),
    )(params, x)

    return out_t[:, :bs].T.astype(out_dtype)


def dae_nn_reference(t, coords, mass1, F1):
    """Pure-JAX reference of the same forward pass (correctness check)."""
    del t
    bs = coords.shape[0]
    q = coords[:, :DOF]
    v = coords[:, DOF:2 * DOF]
    m1 = mass1[0]
    F = jnp.stack([jnp.zeros((bs,), coords.dtype),
                   jnp.full((bs,), -F1[0], coords.dtype)], axis=-1)
    vv = jnp.sum(v * v, axis=-1, keepdims=True)
    qq = jnp.sum(q * q, axis=-1, keepdims=True)
    qF = jnp.sum(q * F, axis=-1, keepdims=True)
    lam = (-m1 * vv - qF) / qq
    a = (F + lam * q) / m1
    return jnp.concatenate([v, a], axis=-1)


if __name__ == "__main__":
    key = jax.random.PRNGKey(0)
    k_m, k_f, k_th, k_om, k_lam = jax.random.split(key, 5)

    bs = 8
    dtype = jnp.float32

    # deterministic parameter init matching the PyTorch module: 0.1 * randn(1)
    mass1 = 0.1 * jax.random.normal(k_m, (1,), dtype)   # M_Net.mass1
    F1 = 0.1 * jax.random.normal(k_f, (1,), dtype)      # F_Net.F1

    # example state: bob on the unit circle, tangential velocity, dummy lambda
    theta = jax.random.normal(k_th, (bs,), dtype)
    omega = jax.random.normal(k_om, (bs,), dtype)
    q = jnp.stack([jnp.sin(theta), -jnp.cos(theta)], axis=-1)             # (bs, 2)
    v = omega[:, None] * jnp.stack([jnp.cos(theta), jnp.sin(theta)], -1)  # (bs, 2)
    lam0 = 0.1 * jax.random.normal(k_lam, (bs, 1), dtype)
    coords = jnp.concatenate([q, v, lam0], axis=-1)                       # (bs, 5)
    t = jnp.zeros((), dtype)

    out = dae_nn_forward(t, coords, mass1, F1)
    out = jax.block_until_ready(out)

    ref = dae_nn_reference(t, coords, mass1, F1)
    assert out.shape == (bs, 2 * DOF)
    assert jnp.allclose(out, ref, rtol=1e-4, atol=1e-4), (out, ref)

    print("KERNEL_OK")
</pallas_src>

<mosaic_0001>
module attributes {stable_mosaic.version = 11 : i64} {
  func.func @dae_kernel(%arg0: i32, %arg1: memref<2xf32, #tpu.memory_space<smem>>, %arg2: memref<4x128xf32, #tpu.memory_space<vmem>>, %arg3: memref<4x128xf32, #tpu.memory_space<vmem>>) attributes {dimension_semantics = [#tpu.dimension_semantics<parallel>], iteration_bounds = array<i64: 1>, scalar_prefetch = 0 : i64, scratch_operands = 0 : i64, tpu.core_type = #tpu.core_type<tc>, window_params = [{transform_indices = @transform_0, window_bounds = array<i64: 2>}, {transform_indices = @transform_1, window_bounds = array<i64: 4, 128>}, {transform_indices = @transform_2, window_bounds = array<i64: 4, 128>}]} {
    %c0 = arith.constant 0 : index
    %0 = memref.load %arg1[%c0] : memref<2xf32, #tpu.memory_space<smem>>
    %c1 = arith.constant 1 : index
    %1 = memref.load %arg1[%c1] : memref<2xf32, #tpu.memory_space<smem>>
    %cst = arith.constant 1.000000e+00 : f32
    %2 = arith.divf %cst, %0 : f32
    %c0_0 = arith.constant 0 : index
    %c0_1 = arith.constant 0 : index
    %3 = vector.load %arg2[%c0_0, %c0_1] : memref<4x128xf32, #tpu.memory_space<vmem>>, vector<1x128xf32>
    %c1_2 = arith.constant 1 : index
    %c0_3 = arith.constant 0 : index
    %4 = vector.load %arg2[%c1_2, %c0_3] : memref<4x128xf32, #tpu.memory_space<vmem>>, vector<1x128xf32>
    %c2 = arith.constant 2 : index
    %c0_4 = arith.constant 0 : index
    %5 = vector.load %arg2[%c2, %c0_4] : memref<4x128xf32, #tpu.memory_space<vmem>>, vector<1x128xf32>
    %c3 = arith.constant 3 : index
    %c0_5 = arith.constant 0 : index
    %6 = vector.load %arg2[%c3, %c0_5] : memref<4x128xf32, #tpu.memory_space<vmem>>, vector<1x128xf32>
    %7 = arith.mulf %5, %5 : vector<1x128xf32>
    %8 = arith.mulf %6, %6 : vector<1x128xf32>
    %9 = arith.addf %7, %8 : vector<1x128xf32>
    %10 = arith.mulf %3, %3 : vector<1x128xf32>
    %11 = arith.mulf %4, %4 : vector<1x128xf32>
    %12 = arith.addf %10, %11 : vector<1x128xf32>
    %13 = vector.broadcast %1 : f32 to vector<1x128xf32>
    %14 = arith.mulf %13, %4 : vector<1x128xf32>
    %15 = vector.broadcast %0 : f32 to vector<1x128xf32>
    %16 = arith.mulf %15, %9 : vector<1x128xf32>
    %17 = arith.subf %14, %16 : vector<1x128xf32>
    %18 = arith.divf %17, %12 : vector<1x128xf32>
    %c2_6 = arith.constant 2 : index
    %c0_7 = arith.constant 0 : index
    %19 = vector.load %arg2[%c2_6, %c0_7] : memref<4x128xf32, #tpu.memory_space<vmem>>, vector<2x128xf32>
    %c0_8 = arith.constant 0 : index
    %c0_9 = arith.constant 0 : index
    %20 = vector.load %arg3[%c0_8, %c0_9] : memref<4x128xf32, #tpu.memory_space<vmem>>, vector<2x128xf32>
    tpu.vector_store %arg3[%c0_8, %c0_9], %19 {strides = array<i32>} : memref<4x128xf32, #tpu.memory_space<vmem>>, vector<2x128xf32>,
    %21 = arith.mulf %18, %3 : vector<1x128xf32>
    %22 = vector.broadcast %2 : f32 to vector<1x128xf32>
    %23 = arith.mulf %21, %22 : vector<1x128xf32>
    %c2_10 = arith.constant 2 : index
    %c0_11 = arith.constant 0 : index
    %24 = vector.load %arg3[%c2_10, %c0_11] : memref<4x128xf32, #tpu.memory_space<vmem>>, vector<1x128xf32>
    tpu.vector_store %arg3[%c2_10, %c0_11], %23 {strides = array<i32>} : memref<4x128xf32, #tpu.memory_space<vmem>>, vector<1x128xf32>,
    %25 = arith.mulf %18, %4 : vector<1x128xf32>
    %26 = vector.broadcast %1 : f32 to vector<1x128xf32>
    %27 = arith.subf %25, %26 : vector<1x128xf32>
    %28 = vector.broadcast %2 : f32 to vector<1x128xf32>
    %29 = arith.mulf %27, %28 : vector<1x128xf32>
    %c3_12 = arith.constant 3 : index
    %c0_13 = arith.constant 0 : index
    %30 = vector.load %arg3[%c3_12, %c0_13] : memref<4x128xf32, #tpu.memory_space<vmem>>, vector<1x128xf32>
    tpu.vector_store %arg3[%c3_12, %c0_13], %29 {strides = array<i32>} : memref<4x128xf32, #tpu.memory_space<vmem>>, vector<1x128xf32>,
    return
  }
  func.func @transform_0(%arg0: i32) -> i32 {
    %c0_i32 = arith.constant 0 : i32
    %c0_i32_0 = arith.constant 0 : i32
    return %c0_i32 : i32
  }
  func.func @transform_1(%arg0: i32) -> (i32, i32) {
    %c0_i32 = arith.constant 0 : i32
    %c0_i32_0 = arith.constant 0 : i32
    return %c0_i32, %arg0 : i32, i32
  }
  func.func @transform_2(%arg0: i32) -> (i32, i32) {
    %c0_i32 = arith.constant 0 : i32
    %c0_i32_0 = arith.constant 0 : i32
    return %c0_i32, %arg0 : i32, i32
  }
}

</mosaic_0001>

<llo_original>
// kernel: tpu_custom_call.1
$region0: #{tpu_custom_call.1}
  #allocation0 [shape = 'u32[]', space=smem, size = 0x4, offset = 0x4, fixed_abs, tag = 'smem constant byte address 0x4 - core index']
  #allocation1 [shape = 'u32[72,128]{1,0:T(1,128)}', space=vmem, size = 0x9000, scoped, tag = 'internal scratch']
  %s0 = inlined_call_operand.hbm [shape: f32[2], index: 0, kind: input, shape index: {}]
  %s1 = inlined_call_operand.hbm [shape: f32[4,128], index: 1, kind: input, shape index: {}]
  %s2 = inlined_call_operand.hbm [shape: f32[4,128], index: 2, kind: output, shape index: {}]
  %s3 = sld [smem:[#allocation0]]
  $region26: #{tpu_custom_call.1} parent=0
    _
  %s5 = ssub.s32 1, %s3
  %s6 = scalar_select 0, %s5, %s3
  $region1: #{tpu_custom_call.1} parent=0
    #allocation2 [shape = 'u8[512]{0}', space=smem, size = 0x200, scoped, tag = 'input window, operand 0, single buffered']
    #allocation3 [shape = 's32[1]{0}', space=sflag, size = 0x4, scoped, tag = 'scoped memory for tpu_custom_call.1']
    #allocation4 [shape = 's32[1]{0}', space=sflag, size = 0x4, scoped, tag = 'scoped memory for tpu_custom_call.1']
    #allocation5 [shape = 's32[1]{0}', space=sflag, size = 0x4, scoped, tag = 'scoped memory for tpu_custom_call.1']
    #allocation6 [shape = 'u8[2048]{0}', space=vmem, size = 0x800, scoped, tag = 'input window, operand 1, single buffered']
    #allocation7 [shape = 'u8[2048]{0}', space=vmem, size = 0x800, scoped, tag = 'output window, operand 0, single buffered']
    %7 = vsyncpa [#allocation5], 0
    %8 = vsyncpa [#allocation3], 0
    %9 = vsyncpa [#allocation4], 0
    // Predicated region
    $region2: #{tpu_custom_call.1} parent=1 // pred_check
      _
    $region3: #{tpu_custom_call.1} parent=1 // pred_check_branch
      %11 = sbr.rel (0) target = $region5
    $region4: #{tpu_custom_call.1} parent=1 // pred_region
      %13 = vsyncadd [#allocation5], 0
      %s15 = sshll.u32 %s0, 4
      %s16 = int_to_ptr.hbm [resolvable:$true] %s15
      %18 = dma.hbm_to_smem %s16, 16, [#allocation2], [#allocation5]
    $region5: #{tpu_custom_call.1} parent=1 // pred_fallthru
      _
    // Predicated region
    $region6: #{tpu_custom_call.1} parent=1 // pred_check
      _
    $region7: #{tpu_custom_call.1} parent=1 // pred_check_branch
      %20 = sbr.rel (0) target = $region9
    $region8: #{tpu_custom_call.1} parent=1 // pred_region
      %22 = vsyncadd [#allocation3], 0
      %s24 = sshll.u32 %s1, 4
      %s25 = int_to_ptr.hbm [resolvable:$true] %s24
      %s26 = sshll.u32 [#allocation6], 4
      %s27 = int_to_ptr.vmem [resolvable:$true] %s26
      %29 = dma.hbm_to_vmem [thread:$0]  %s25, 64, %s27, [#allocation3]
    $region9: #{tpu_custom_call.1} parent=1 // pred_fallthru
      _
    // Predicated region
    $region10: #{tpu_custom_call.1} parent=1 // pred_check
      _
    $region11: #{tpu_custom_call.1} parent=1 // pred_check_branch
      %31 = sbr.rel (0) target = $region13
    $region12: #{tpu_custom_call.1} parent=1 // pred_region
      %33 = dma.done [#allocation5], 16
    $region13: #{tpu_custom_call.1} parent=1 // pred_fallthru
      _
    // Predicated region
    $region14: #{tpu_custom_call.1} parent=1 // pred_check
      _
    $region15: #{tpu_custom_call.1} parent=1 // pred_check_branch
      %35 = sbr.rel (0) target = $region17
    $region16: #{tpu_custom_call.1} parent=1 // pred_region
      %37 = dma.done [#allocation3], 64
    $region17: #{tpu_custom_call.1} parent=1 // pred_fallthru
      _
    %38 = sfence
    %s39 = sld [smem:[#allocation2]]
    %s40 = sld [smem:[#allocation2 + $0x1]]
    %v41 = vstv %s39
    %v42 = vrcp.pop %v41
    %v43 = vmul.f32 %v41, %v42
    %v44 = vsub.f32 1.0, %v43
    %v45 = vmul.f32 %v42, %v44
    %v46 = vadd.f32 %v42, %v45
    %vm47 = vweird.f32 %v41
    %vm48 = vweird.f32 %v42
    %vm49 = vmor %vm47, %vm48
    %v50 = vsel %vm49, %v42, %v46
    %v51 = vand.u32 2147483647, %v41
    %vm52 = vcmp.eq.f32.partialorder %v51, 8.507059e+37
    %v53 = vand.u32 %v41, 2147483648
    %v54 = vor.u32 1.1754944e-38, %v53
    %v55 = vsel %vm52, %v54, %v50
    %s56 = vtos %v55
    %v57 = vld [vmem:[#allocation6] sm:$0x1]
    %v58 = vld [vmem:[#allocation6 + $0x1] sm:$0x1]
    %v59 = vld [vmem:[#allocation6 + $0x2] sm:$0x1]
    %v60 = vld [vmem:[#allocation6 + $0x3] sm:$0x1]
    %v61 = vmul.f32 %v59, %v59
    %v62 = vmul.f32 %v60, %v60
    %v63 = vadd.f32 %v61, %v62
    %v64 = vmul.f32 %v57, %v57
    %v65 = vmul.f32 %v58, %v58
    %v66 = vadd.f32 %v64, %v65
    %v67 = vstv %s40
    %v68 = vmul.f32 %v67, %v58
    %v69 = vstv %s39
    %v70 = vmul.f32 %v69, %v63
    %v71 = vsub.f32 %v68, %v70
    %v72 = vrcp.pop %v66
    %v73 = vmul.f32 %v66, %v72
    %v74 = vsub.f32 1.0, %v73
    %v75 = vmul.f32 %v72, %v74
    %v76 = vadd.f32 %v72, %v75
    %vm77 = vweird.f32 %v66
    %vm78 = vweird.f32 %v72
    %vm79 = vmor %vm77, %vm78
    %v80 = vsel %vm79, %v72, %v76
    %v81 = vand.u32 2147483647, %v66
    %vm82 = vcmp.eq.f32.partialorder %v81, 8.507059e+37
    %v83 = vand.u32 %v66, 2147483648
    %v84 = vor.u32 1.1754944e-38, %v83
    %v85 = vsel %vm82, %v84, %v80
    %v86 = vmul.f32 %v71, %v85
    %v87 = vld [vmem:[#allocation6 + $0x2] sm:$0x3]
    %88 = vst [vmem:[#allocation7] sm:$0x3] %v87
    %v89 = vmul.f32 %v86, %v57
    %v90 = vstv %s56
    %v91 = vmul.f32 %v89, %v90
    %92 = vst [vmem:[#allocation7 + $0x2] sm:$0x1] %v91
    %v93 = vmul.f32 %v86, %v58
    %v94 = vsub.f32 %v93, %v67
    %v95 = vmul.f32 %v94, %v90
    %96 = vst [vmem:[#allocation7 + $0x3] sm:$0x1] %v95
    // Predicated region
    $region18: #{tpu_custom_call.1} parent=1 // pred_check
      _
    $region19: #{tpu_custom_call.1} parent=1 // pred_check_branch
      %98 = sbr.rel (0) target = $region21
    $region20: #{tpu_custom_call.1} parent=1 // pred_region
      %100 = vsyncadd [#allocation4], 0
      %s102 = sshll.u32 [#allocation7], 4
      %s103 = int_to_ptr.vmem [resolvable:$true] %s102
      %s104 = sshll.u32 %s2, 4
      %s105 = int_to_ptr.hbm [resolvable:$true] %s104
      %107 = dma.vmem_to_hbm [thread:$0]  %s103, 64, %s105, [#allocation4]
    $region21: #{tpu_custom_call.1} parent=1 // pred_fallthru
      _
    // Predicated region
    $region22: #{tpu_custom_call.1} parent=1 // pred_check
      _
    $region23: #{tpu_custom_call.1} parent=1 // pred_check_branch
      %109 = sbr.rel (0) target = $region25
    $region24: #{tpu_custom_call.1} parent=1 // pred_region
      %111 = dma.done [#allocation4], 64
    $region25: #{tpu_custom_call.1} parent=1 // pred_fallthru
      _
    %112 = vsyncpa [#allocation3], 1
    %113 = vsyncpa [#allocation4], 1
    %114 = vsyncpa [#allocation5], 1

</llo_original>
